<compile_context>
chip_gen: v7x
topology: tpu7x:2x2x1
jax: 0.10.0
libtpu: 0.0.40
codegen_flags: <defaults>
</compile_context>

<pallas_src>
import functools

import jax
import jax.numpy as jnp
from jax.experimental import pallas as pl
from jax.experimental.pallas import tpu as pltpu


LANES = 128        # lane-pad hidden feature dims to this
NUM_LAYERS = 4     # 3 backbone Linear layers + mu head


def _round_up(x, m):
    return ((x + m - 1) // m) * m


def _choose_batch_tile(batch, block_batch):
    """Batch tile: multiple of 8; >= 2 grid steps when possible (v7x dual TC)."""
    b8 = _round_up(max(batch, 1), 8)
    if b8 <= 8:
        return b8                                 # too small to split
    half = _round_up((b8 + 1) // 2, 8)            # aim for >= 2 tiles
    return max(8, min(block_batch, half))


def _actor_forward_kernel(obs_ref, w0_ref, w_ref, b_ref, out_ref):
    """One batch tile of the actor forward.

    obs_ref: (TB, obs_dim) bf16   un-padded observations (lane dim = obs_dim)
    w0_ref:  (obs_dim, 128) bf16  first-layer weight, zero-padded output lanes
    w_ref:   (3, 128, 128) bf16   packed, zero-padded layer-2/3/mu weights
    b_ref:   (4, 1, 128) f32      packed, zero-padded biases
    out_ref: (TB, 128) f32        lane-padded tanh(mu)
    """
    # layer 1: obs @ w0  (K = obs_dim), + bias, ReLU
    h = jnp.dot(obs_ref[...], w0_ref[...],
                preferred_element_type=jnp.float32) + b_ref[0]
    h = jnp.maximum(h, 0.0)
    # layer 2: Linear + ReLU
    h = jnp.dot(h.astype(jnp.bfloat16), w_ref[0],
                preferred_element_type=jnp.float32) + b_ref[1]
    h = jnp.maximum(h, 0.0)
    # backbone output layer (no activation)
    latent = jnp.dot(h.astype(jnp.bfloat16), w_ref[1],
                     preferred_element_type=jnp.float32) + b_ref[2]
    # DiagGaussian mu head (unbounded) + tanh squash
    mu = jnp.dot(latent.astype(jnp.bfloat16), w_ref[2],
                 preferred_element_type=jnp.float32) + b_ref[3]
    out_ref[...] = jnp.tanh(mu)                       # f32, EUP


def pack_params(params):
    """One-time packing (call once per parameter update, NOT per forward).

    Returns:
      w0:      (obs_dim, 128) bf16  first-layer weight (true rows, padded cols)
      w_stack: (3, 128, 128)  bf16  zero-padded layer-2/3/mu weights
      b_stack: (4, 1, 128)    f32   zero-padded biases
    """
    w1, b1, w2, b2, w3, b3, wmu, bmu = params
    obs_dim = w1.shape[0]
    for w in (w1, w2, w3, wmu):
        assert w.shape[0] <= LANES and w.shape[1] <= LANES

    w0 = (jnp.zeros((obs_dim, LANES), jnp.float32)
          .at[:, :w1.shape[1]].set(w1)).astype(jnp.bfloat16)
    w_stack = jnp.stack([
        jnp.zeros((LANES, LANES), jnp.float32)
        .at[:w.shape[0], :w.shape[1]].set(w)
        for w in (w2, w3, wmu)
    ]).astype(jnp.bfloat16)                                   # (3, 128, 128)
    b_stack = jnp.stack([
        jnp.zeros((1, LANES), jnp.float32).at[:, :b.shape[1]].set(b)
        for b in (b1, b2, b3, bmu)
    ])                                                        # (4, 1, 128)
    return w0, w_stack, b_stack


@functools.partial(jax.jit, static_argnames=("action_dim", "block_batch"))
def sac_forward(obs, w0, w_stack, b_stack, *, action_dim, block_batch=1024):
    """Deterministic SAC policy forward: obs [B, obs_dim] -> action [B, action_dim]."""
    B, obs_dim = obs.shape
    assert obs_dim == w0.shape[0] and obs_dim <= LANES and action_dim <= LANES

    TB = _choose_batch_tile(B, block_batch)
    Bp = _round_up(B, TB)

    # bf16 obs stream; batch-only pad fuses under this jit (no extra HBM pass).
    obs_bf16 = obs.astype(jnp.bfloat16)
    if Bp != B:
        obs_bf16 = jnp.pad(obs_bf16, ((0, Bp - B), (0, 0)))

    grid = (Bp // TB,)
    flops = 2 * Bp * LANES * (obs_dim + (NUM_LAYERS - 1) * LANES)
    bytes_accessed = (obs_bf16.size * 2 + w0.size * 2 + w_stack.size * 2
                      + b_stack.size * 4 + Bp * LANES * 4)

    out_padded = pl.pallas_call(
        _actor_forward_kernel,
        out_shape=jax.ShapeDtypeStruct((Bp, LANES), jnp.float32),
        grid=grid,
        in_specs=[
            # obs tile: streams across the batch grid; full (un-padded) last dim
            pl.BlockSpec((TB, obs_dim), lambda i: (i, 0)),
            # first-layer weight + packed slabs: constant index -> VMEM-resident
            pl.BlockSpec((obs_dim, LANES), lambda i: (0, 0)),
            pl.BlockSpec((NUM_LAYERS - 1, LANES, LANES), lambda i: (0, 0, 0)),
            pl.BlockSpec((NUM_LAYERS, 1, LANES), lambda i: (0, 0, 0)),
        ],
        out_specs=pl.BlockSpec((TB, LANES), lambda i: (i, 0)),
        compiler_params=pltpu.CompilerParams(
            dimension_semantics=("parallel",)),
        cost_estimate=pl.CostEstimate(
            flops=flops,
            transcendentals=Bp * LANES,
            bytes_accessed=bytes_accessed),
    )(obs_bf16, w0, w_stack, b_stack)

    # lane-dense stores in the kernel; the cheap slice happens here.
    return out_padded[:B, :action_dim]


def init_params(key, obs_dim, hidden_dims, bb_out_dim, action_dim):
    """Deterministic init mimicking nn.Linear's U(-1/sqrt(fan_in), 1/sqrt(fan_in))."""
    dims = [obs_dim] + list(hidden_dims) + [bb_out_dim]
    params = []
    keys = jax.random.split(key, len(dims))  # backbone layers + mu head
    for i, (din, dout) in enumerate(zip(dims[:-1], dims[1:])):
        bound = 1.0 / jnp.sqrt(jnp.float32(din))
        kw, kb = jax.random.split(keys[i])
        w = jax.random.uniform(kw, (din, dout), jnp.float32, -bound, bound)
        b = jax.random.uniform(kb, (1, dout), jnp.float32, -bound, bound)
        params += [w, b]
    bound = 1.0 / jnp.sqrt(jnp.float32(bb_out_dim))
    kw, kb = jax.random.split(keys[-1])
    wmu = jax.random.uniform(kw, (bb_out_dim, action_dim), jnp.float32, -bound, bound)
    bmu = jax.random.uniform(kb, (1, action_dim), jnp.float32, -bound, bound)
    params += [wmu, bmu]
    return tuple(params)


def sac_forward_ref(obs, params):
    """Plain-JAX reference mirroring the kernel's bf16-operand / f32-accum math."""
    w1, b1, w2, b2, w3, b3, wmu, bmu = params

    def mm(x, w):
        return jnp.dot(x.astype(jnp.bfloat16), w.astype(jnp.bfloat16),
                       preferred_element_type=jnp.float32)

    h = jnp.maximum(mm(obs, w1) + b1, 0.0)
    h = jnp.maximum(mm(h, w2) + b2, 0.0)
    latent = mm(h, w3) + b3
    return jnp.tanh(mm(latent, wmu) + bmu)


def sac_forward_ref_f32(obs, params):
    """Full-precision reference for a loose sanity check."""
    w1, b1, w2, b2, w3, b3, wmu, bmu = params
    h = jnp.maximum(obs @ w1 + b1, 0.0)
    h = jnp.maximum(h @ w2 + b2, 0.0)
    latent = h @ w3 + b3
    return jnp.tanh(latent @ wmu + bmu)


if __name__ == "__main__":
    # Small SAC-style configuration (flat observations).
    obs_dim = 16
    action_dim = 4
    actor_hidden_dim = [32, 32]
    actor_bb_out_dim = 32
    batch = 8

    key = jax.random.PRNGKey(0)
    k_obs, k_params = jax.random.split(key)
    obs = jax.random.normal(k_obs, (batch, obs_dim), dtype=jnp.float32)
    params = init_params(k_params, obs_dim, actor_hidden_dim,
                         actor_bb_out_dim, action_dim)

    # Pack once (per parameter update), reuse across forwards.
    w0, w_stack, b_stack = pack_params(params)

    action = sac_forward(obs, w0, w_stack, b_stack, action_dim=action_dim)
    action = jax.block_until_ready(action)

    assert action.shape == (batch, action_dim)
    # tight check vs a reference that mirrors the kernel's bf16 matmul path
    ref_bf16 = sac_forward_ref(obs, params)
    assert jnp.allclose(action, ref_bf16, atol=1e-3, rtol=1e-3), "mismatch vs bf16 reference"
    # loose sanity check vs the full-precision reference
    ref_f32 = sac_forward_ref_f32(obs, params)
    assert jnp.allclose(action, ref_f32, atol=5e-2, rtol=5e-2), "mismatch vs f32 reference"

    print("KERNEL_OK")
</pallas_src>

<mosaic_0001>
module attributes {stable_mosaic.version = 11 : i64} {
  func.func @_actor_forward_kernel(%arg0: i32, %arg1: memref<8x16xbf16, #tpu.memory_space<vmem>>, %arg2: memref<16x128xbf16, #tpu.memory_space<vmem>>, %arg3: memref<3x128x128xbf16, #tpu.memory_space<vmem>>, %arg4: memref<4x1x128xf32, #tpu.memory_space<vmem>>, %arg5: memref<8x128xf32, #tpu.memory_space<vmem>>) attributes {dimension_semantics = [#tpu.dimension_semantics<parallel>], iteration_bounds = array<i64: 1>, scalar_prefetch = 0 : i64, scratch_operands = 0 : i64, tpu.core_type = #tpu.core_type<tc>, window_params = [{transform_indices = @transform_0, window_bounds = array<i64: 8, 16>}, {pipeline_mode = #tpu.pipeline_mode<synchronous>, transform_indices = @transform_1, window_bounds = array<i64: 16, 128>}, {pipeline_mode = #tpu.pipeline_mode<synchronous>, transform_indices = @transform_2, window_bounds = array<i64: 3, 128, 128>}, {pipeline_mode = #tpu.pipeline_mode<synchronous>, transform_indices = @transform_3, window_bounds = array<i64: 4, 1, 128>}, {transform_indices = @transform_4, window_bounds = array<i64: 8, 128>}]} {
    %c0 = arith.constant 0 : index
    %c0_0 = arith.constant 0 : index
    %0 = vector.load %arg1[%c0, %c0_0] : memref<8x16xbf16, #tpu.memory_space<vmem>>, vector<8x16xbf16>
    %c0_1 = arith.constant 0 : index
    %c0_2 = arith.constant 0 : index
    %1 = vector.load %arg2[%c0_1, %c0_2] : memref<16x128xbf16, #tpu.memory_space<vmem>>, vector<16x128xbf16>
    %cst = arith.constant dense<0.000000e+00> : vector<8x128xf32>
    %2 = tpu.matmul %0, %1, %cst {dimension_numbers = #tpu.dot_dimension_numbers<[1], [0], [0], [1], [0, 0, 1, 1], [], []>} : vector<8x16xbf16>, vector<16x128xbf16>, vector<8x128xf32> -> vector<8x128xf32>
    %c0_3 = arith.constant 0 : index
    %c0_4 = arith.constant 0 : index
    %c0_5 = arith.constant 0 : index
    %3 = vector.load %arg4[%c0_3, %c0_4, %c0_5] : memref<4x1x128xf32, #tpu.memory_space<vmem>>, vector<1x1x128xf32>
    %4 = vector.shape_cast %3 : vector<1x1x128xf32> to vector<1x128xf32>
    %5 = vector.broadcast %4 : vector<1x128xf32> to vector<8x128xf32>
    %6 = arith.addf %2, %5 : vector<8x128xf32>
    %cst_6 = arith.constant 0.000000e+00 : f32
    %7 = vector.broadcast %cst_6 : f32 to vector<8x128xf32>
    %8 = arith.maximumf %6, %7 : vector<8x128xf32>
    %9 = arith.truncf %8 : vector<8x128xf32> to vector<8x128xbf16>
    %c0_7 = arith.constant 0 : index
    %c0_8 = arith.constant 0 : index
    %c0_9 = arith.constant 0 : index
    %10 = vector.load %arg3[%c0_7, %c0_8, %c0_9] : memref<3x128x128xbf16, #tpu.memory_space<vmem>>, vector<1x128x128xbf16>
    %11 = vector.shape_cast %10 : vector<1x128x128xbf16> to vector<128x128xbf16>
    %cst_10 = arith.constant dense<0.000000e+00> : vector<8x128xf32>
    %12 = tpu.matmul %9, %11, %cst_10 {dimension_numbers = #tpu.dot_dimension_numbers<[1], [0], [0], [1], [0, 0, 1, 1], [], []>} : vector<8x128xbf16>, vector<128x128xbf16>, vector<8x128xf32> -> vector<8x128xf32>
    %c1 = arith.constant 1 : index
    %c0_11 = arith.constant 0 : index
    %c0_12 = arith.constant 0 : index
    %13 = vector.load %arg4[%c1, %c0_11, %c0_12] : memref<4x1x128xf32, #tpu.memory_space<vmem>>, vector<1x1x128xf32>
    %14 = vector.shape_cast %13 : vector<1x1x128xf32> to vector<1x128xf32>
    %15 = vector.broadcast %14 : vector<1x128xf32> to vector<8x128xf32>
    %16 = arith.addf %12, %15 : vector<8x128xf32>
    %cst_13 = arith.constant 0.000000e+00 : f32
    %17 = vector.broadcast %cst_13 : f32 to vector<8x128xf32>
    %18 = arith.maximumf %16, %17 : vector<8x128xf32>
    %19 = arith.truncf %18 : vector<8x128xf32> to vector<8x128xbf16>
    %c1_14 = arith.constant 1 : index
    %c0_15 = arith.constant 0 : index
    %c0_16 = arith.constant 0 : index
    %20 = vector.load %arg3[%c1_14, %c0_15, %c0_16] : memref<3x128x128xbf16, #tpu.memory_space<vmem>>, vector<1x128x128xbf16>
    %21 = vector.shape_cast %20 : vector<1x128x128xbf16> to vector<128x128xbf16>
    %cst_17 = arith.constant dense<0.000000e+00> : vector<8x128xf32>
    %22 = tpu.matmul %19, %21, %cst_17 {dimension_numbers = #tpu.dot_dimension_numbers<[1], [0], [0], [1], [0, 0, 1, 1], [], []>} : vector<8x128xbf16>, vector<128x128xbf16>, vector<8x128xf32> -> vector<8x128xf32>
    %c2 = arith.constant 2 : index
    %c0_18 = arith.constant 0 : index
    %c0_19 = arith.constant 0 : index
    %23 = vector.load %arg4[%c2, %c0_18, %c0_19] : memref<4x1x128xf32, #tpu.memory_space<vmem>>, vector<1x1x128xf32>
    %24 = vector.shape_cast %23 : vector<1x1x128xf32> to vector<1x128xf32>
    %25 = vector.broadcast %24 : vector<1x128xf32> to vector<8x128xf32>
    %26 = arith.addf %22, %25 : vector<8x128xf32>
    %27 = arith.truncf %26 : vector<8x128xf32> to vector<8x128xbf16>
    %c2_20 = arith.constant 2 : index
    %c0_21 = arith.constant 0 : index
    %c0_22 = arith.constant 0 : index
    %28 = vector.load %arg3[%c2_20, %c0_21, %c0_22] : memref<3x128x128xbf16, #tpu.memory_space<vmem>>, vector<1x128x128xbf16>
    %29 = vector.shape_cast %28 : vector<1x128x128xbf16> to vector<128x128xbf16>
    %cst_23 = arith.constant dense<0.000000e+00> : vector<8x128xf32>
    %30 = tpu.matmul %27, %29, %cst_23 {dimension_numbers = #tpu.dot_dimension_numbers<[1], [0], [0], [1], [0, 0, 1, 1], [], []>} : vector<8x128xbf16>, vector<128x128xbf16>, vector<8x128xf32> -> vector<8x128xf32>
    %c3 = arith.constant 3 : index
    %c0_24 = arith.constant 0 : index
    %c0_25 = arith.constant 0 : index
    %31 = vector.load %arg4[%c3, %c0_24, %c0_25] : memref<4x1x128xf32, #tpu.memory_space<vmem>>, vector<1x1x128xf32>
    %32 = vector.shape_cast %31 : vector<1x1x128xf32> to vector<1x128xf32>
    %33 = vector.broadcast %32 : vector<1x128xf32> to vector<8x128xf32>
    %34 = arith.addf %30, %33 : vector<8x128xf32>
    %35 = math.tanh %34 : vector<8x128xf32>
    %c0_26 = arith.constant 0 : index
    %c0_27 = arith.constant 0 : index
    %36 = vector.load %arg5[%c0_26, %c0_27] : memref<8x128xf32, #tpu.memory_space<vmem>>, vector<8x128xf32>
    tpu.vector_store %arg5[%c0_26, %c0_27], %35 {strides = array<i32>} : memref<8x128xf32, #tpu.memory_space<vmem>>, vector<8x128xf32>,
    return
  }
  func.func @transform_0(%arg0: i32) -> (i32, i32) {
    %c0_i32 = arith.constant 0 : i32
    %c0_i32_0 = arith.constant 0 : i32
    return %arg0, %c0_i32 : i32, i32
  }
  func.func @transform_1(%arg0: i32) -> (i32, i32) {
    %c0_i32 = arith.constant 0 : i32
    %c0_i32_0 = arith.constant 0 : i32
    %c0_i32_1 = arith.constant 0 : i32
    return %c0_i32, %c0_i32_0 : i32, i32
  }
  func.func @transform_2(%arg0: i32) -> (i32, i32, i32) {
    %c0_i32 = arith.constant 0 : i32
    %c0_i32_0 = arith.constant 0 : i32
    %c0_i32_1 = arith.constant 0 : i32
    %c0_i32_2 = arith.constant 0 : i32
    return %c0_i32, %c0_i32_0, %c0_i32_1 : i32, i32, i32
  }
  func.func @transform_3(%arg0: i32) -> (i32, i32, i32) {
    %c0_i32 = arith.constant 0 : i32
    %c0_i32_0 = arith.constant 0 : i32
    %c0_i32_1 = arith.constant 0 : i32
    %c0_i32_2 = arith.constant 0 : i32
    return %c0_i32, %c0_i32_0, %c0_i32_1 : i32, i32, i32
  }
  func.func @transform_4(%arg0: i32) -> (i32, i32) {
    %c0_i32 = arith.constant 0 : i32
    %c0_i32_0 = arith.constant 0 : i32
    return %arg0, %c0_i32 : i32, i32
  }
}

</mosaic_0001>

<llo_original>
// kernel: sac_forward.1
$region0: #{sac_forward.1}
  #allocation0 [shape = 'u32[]', space=smem, size = 0x4, offset = 0x4, fixed_abs, tag = 'smem constant byte address 0x4 - core index']
  #allocation1 [shape = 'u32[144,128]{1,0:T(1,128)}', space=vmem, size = 0x12000, scoped, tag = 'internal scratch']
  %s0 = inlined_call_operand.vmem [shape: bf16[8,16], index: 0, kind: input, shape index: {}]
  %s1 = inlined_call_operand.vmem [shape: bf16[16,128], index: 1, kind: input, shape index: {}]
  %s2 = inlined_call_operand.hbm [shape: bf16[3,128,128], index: 2, kind: input, shape index: {}]
  %s3 = inlined_call_operand.vmem [shape: f32[4,1,128], index: 3, kind: input, shape index: {}]
  %s4 = inlined_call_operand.vmem [shape: f32[8,128], index: 4, kind: output, shape index: {}]
  %s5 = sld [smem:[#allocation0]]
  $region30: #{sac_forward.1} parent=0
    _
  %s7 = ssub.s32 1, %s5
  %s8 = scalar_select 0, %s7, %s5
  $region1: #{sac_forward.1} parent=0
    #allocation2 [shape = 'u8[98304]{0}', space=vmem, size = 0x18000, scoped, tag = 'input window, operand 2, single buffered']
    #allocation3 [shape = 's32[1]{0}', space=sflag, size = 0x4, scoped, tag = 'scoped memory for sac_forward.1']
    %9 = vsyncpa [#allocation3], 0
    // Predicated region
    $region2: #{sac_forward.1} parent=1 // pred_check
      _
    $region3: #{sac_forward.1} parent=1 // pred_check_branch
      %11 = sbr.rel (0) target = $region5
    $region4: #{sac_forward.1} parent=1 // pred_region
      _
    $region5: #{sac_forward.1} parent=1 // pred_fallthru
      _
    // Predicated region
    $region6: #{sac_forward.1} parent=1 // pred_check
      _
    $region7: #{sac_forward.1} parent=1 // pred_check_branch
      %13 = sbr.rel (0) target = $region9
    $region8: #{sac_forward.1} parent=1 // pred_region
      _
    $region9: #{sac_forward.1} parent=1 // pred_fallthru
      _
    // Predicated region
    $region10: #{sac_forward.1} parent=1 // pred_check
      _
    $region11: #{sac_forward.1} parent=1 // pred_check_branch
      %15 = sbr.rel (0) target = $region13
    $region12: #{sac_forward.1} parent=1 // pred_region
      %s17 = ssub.s32 3072, 3072
      %18 = vsyncadd [#allocation3], %s17
      %s19 = sshll.u32 [#allocation2], 4
      %s20 = int_to_ptr.vmem [resolvable:$true] %s19
      %25 = dma.hbm_to_vmem [thread:$0]  %s2, 3072, %s20, [#allocation3], 64, 64, 4
    $region13: #{sac_forward.1} parent=1 // pred_fallthru
      _
    // Predicated region
    $region14: #{sac_forward.1} parent=1 // pred_check
      _
    $region15: #{sac_forward.1} parent=1 // pred_check_branch
      %27 = sbr.rel (0) target = $region17
    $region16: #{sac_forward.1} parent=1 // pred_region
      _
    $region17: #{sac_forward.1} parent=1 // pred_fallthru
      _
    // Predicated region
    $region18: #{sac_forward.1} parent=1 // pred_check
      _
    $region19: #{sac_forward.1} parent=1 // pred_check_branch
      %29 = sbr.rel (0) target = $region21
    $region20: #{sac_forward.1} parent=1 // pred_region
      %30 = dma.done [#allocation3], 3072
    $region21: #{sac_forward.1} parent=1 // pred_fallthru
      _
    %v32 = vld [vmem:[%s0] sm:$0xf]
    %v33 = vld [vmem:[%s1] sm:$0xf]
    %v34 = vld [vmem:[%s1 + $0x4] sm:$0xf]
    %v35 = vld [vmem:[%s3] sm:$0x1]
    %v37 = vlaneseq
    %v38 = vshrl.u32 %v37, 7
    %v39 = vsub.s32 0, %v38
    %v40 = vrot.slane %v35, %v39
    %v44 = vunpack.c.l.b16 %v33
    %v45 = vunpack.c.l.b16 %v34
    %v46 = vpack.c.b16 %v45, %v44
    %vm48 = vcmask 130048
    %v50 = vsel %vm48, %v32, 0
    %52 = vmatprep.subr.bf16.mxu0 0
    %53 = vmatpush1.bf16.msra.mxu0 %v46
    %54 = vmatprep.subr.bf16.mxu0 0
    %55 = vmatpush1.bf16.msra.mxu0 0
    %56 = vmatprep.subr.bf16.mxu0 0
    %57 = vmatpush1.bf16.msra.mxu0 0
    %58 = vmatprep.subr.bf16.mxu0 0
    %59 = vmatpush1.bf16.msra.mxu0 0
    %60 = vmatprep.subr.bf16.mxu0 0
    %61 = vmatpush1.bf16.msra.mxu0 0
    %62 = vmatprep.subr.bf16.mxu0 0
    %63 = vmatpush1.bf16.msra.mxu0 0
    %64 = vmatprep.subr.bf16.mxu0 0
    %65 = vmatpush1.bf16.msra.mxu0 0
    %66 = vmatprep.subr.bf16.mxu0 0
    %67 = vmatpush1.bf16.msra.mxu0 0
    %68 = vmatprep.subr.bf16.mxu0 0
    %69 = vmatpush1.bf16.msra.mxu0 0
    %70 = vmatprep.subr.bf16.mxu0 0
    %71 = vmatpush1.bf16.msra.mxu0 0
    %72 = vmatprep.subr.bf16.mxu0 0
    %73 = vmatpush1.bf16.msra.mxu0 0
    %74 = vmatprep.subr.bf16.mxu0 0
    %75 = vmatpush1.bf16.msra.mxu0 0
    %76 = vmatprep.subr.bf16.mxu0 0
    %77 = vmatpush1.bf16.msra.mxu0 0
    %78 = vmatprep.subr.bf16.mxu0 0
    %79 = vmatpush1.bf16.msra.mxu0 0
    %80 = vmatprep.subr.bf16.mxu0 0
    %81 = vmatpush1.bf16.msra.mxu0 0
    %82 = vmatprep.subr.bf16.mxu0 0
    %83 = vmatpush1.bf16.msra.mxu0 0
    %84 = vmatprep.mubr.bf16.mxu0 0
    %85 = vmatmul.mubr.bf16.gmra.mrb[0].mxu0 %v50
    %v86 = vpop.f32.mrb[0].mxu0
    %v87 = vadd.f32 %v40, %v86
    %v88 = vpop.f32.mrb[0].mxu0
    %v89 = vpop.f32.mrb[0].mxu0
    %v90 = vpop.f32.mrb[0].mxu0
    %91 = vdwg.mxu0
    %v92 = vmax.f32 %v87, 0.0
    %v93 = vpack.c.bf16 %v92, %v92
    %v94 = vld [vmem:[#allocation2] sm:$0xf]
    %v95 = vld [vmem:[#allocation2 + $0x4] sm:$0xf]
    %v96 = vld [vmem:[#allocation2 + $0x8] sm:$0xf]
    %v97 = vld [vmem:[#allocation2 + $0xc] sm:$0xf]
    %v98 = vld [vmem:[#allocation2 + $0x10] sm:$0xf]
    %v99 = vld [vmem:[#allocation2 + $0x14] sm:$0xf]
    %v100 = vld [vmem:[#allocation2 + $0x18] sm:$0xf]
    %v101 = vld [vmem:[#allocation2 + $0x1c] sm:$0xf]
    %v102 = vld [vmem:[#allocation2 + $0x20] sm:$0xf]
    %v103 = vld [vmem:[#allocation2 + $0x24] sm:$0xf]
    %v104 = vld [vmem:[#allocation2 + $0x28] sm:$0xf]
    %v105 = vld [vmem:[#allocation2 + $0x2c] sm:$0xf]
    %v106 = vld [vmem:[#allocation2 + $0x30] sm:$0xf]
    %v107 = vld [vmem:[#allocation2 + $0x34] sm:$0xf]
    %v108 = vld [vmem:[#allocation2 + $0x38] sm:$0xf]
    %v109 = vld [vmem:[#allocation2 + $0x3c] sm:$0xf]
    %s110 = scalar_lea.vmem %s3, 1
    %v111 = vld [vmem:[%s110] sm:$0x1]
    %v113 = vlaneseq
    %v114 = vshrl.u32 %v113, 7
    %v115 = vsub.s32 0, %v114
    %v116 = vrot.slane %v111, %v115
    %v134 = vunpack.c.l.b16 %v94
    %v135 = vunpack.c.l.b16 %v95
    %v136 = vunpack.c.l.b16 %v96
    %v137 = vunpack.c.l.b16 %v97
    %v138 = vunpack.c.l.b16 %v98
    %v139 = vunpack.c.l.b16 %v99
    %v140 = vunpack.c.l.b16 %v100
    %v141 = vunpack.c.l.b16 %v101
    %v142 = vunpack.c.l.b16 %v102
    %v143 = vunpack.c.l.b16 %v103
    %v144 = vunpack.c.l.b16 %v104
    %v145 = vunpack.c.l.b16 %v105
    %v146 = vunpack.c.l.b16 %v106
    %v147 = vunpack.c.l.b16 %v107
    %v148 = vunpack.c.l.b16 %v108
    %v149 = vunpack.c.l.b16 %v109
    %v150 = vpack.c.b16 %v135, %v134
    %v151 = vpack.c.b16 %v137, %v136
    %v152 = vpack.c.b16 %v139, %v138
    %v153 = vpack.c.b16 %v141, %v140
    %v154 = vpack.c.b16 %v143, %v142
    %v155 = vpack.c.b16 %v145, %v144
    %v156 = vpack.c.b16 %v147, %v146
    %v157 = vpack.c.b16 %v149, %v148
    %166 = vmatprep.subr.bf16.mxu0 0
    %167 = vmatpush1.bf16.msra.mxu0 %v150
    %168 = vmatprep.subr.bf16.mxu0 0
    %169 = vmatpush1.bf16.msra.mxu0 %v151
    %170 = vmatprep.subr.bf16.mxu0 0
    %171 = vmatpush1.bf16.msra.mxu0 %v152
    %172 = vmatprep.subr.bf16.mxu0 0
    %173 = vmatpush1.bf16.msra.mxu0 %v153
    %174 = vmatprep.subr.bf16.mxu0 0
    %175 = vmatpush1.bf16.msra.mxu0 %v154
    %176 = vmatprep.subr.bf16.mxu0 0
    %177 = vmatpush1.bf16.msra.mxu0 %v155
    %178 = vmatprep.subr.bf16.mxu0 0
    %179 = vmatpush1.bf16.msra.mxu0 %v156
    %180 = vmatprep.subr.bf16.mxu0 0
    %181 = vmatpush1.bf16.msra.mxu0 %v157
    %182 = vmatprep.subr.bf16.mxu0 0
    %183 = vmatpush1.bf16.msra.mxu0 0
    %184 = vmatprep.subr.bf16.mxu0 0
    %185 = vmatpush1.bf16.msra.mxu0 0
    %186 = vmatprep.subr.bf16.mxu0 0
    %187 = vmatpush1.bf16.msra.mxu0 0
    %188 = vmatprep.subr.bf16.mxu0 0
    %189 = vmatpush1.bf16.msra.mxu0 0
    %190 = vmatprep.subr.bf16.mxu0 0
    %191 = vmatpush1.bf16.msra.mxu0 0
    %192 = vmatprep.subr.bf16.mxu0 0
    %193 = vmatpush1.bf16.msra.mxu0 0
    %194 = vmatprep.subr.bf16.mxu0 0
    %195 = vmatpush1.bf16.msra.mxu0 0
    %196 = vmatprep.subr.bf16.mxu0 0
    %197 = vmatpush1.bf16.msra.mxu0 0
    %198 = vmatprep.mubr.bf16.mxu0 0
    %199 = vmatmul.mubr.bf16.gmra.mrb[0].mxu0 %v93
    %v200 = vpop.f32.mrb[0].mxu0
    %v201 = vadd.f32 %v116, %v200
    %v202 = vpop.f32.mrb[0].mxu0
    %v203 = vpop.f32.mrb[0].mxu0
    %v204 = vpop.f32.mrb[0].mxu0
    %205 = vdwg.mxu0
    %v206 = vmax.f32 %v201, 0.0
    %v207 = vpack.c.bf16 %v206, %v206
    %s208 = scalar_lea.vmem [#allocation2], 64
    %v209 = vld [vmem:[%s208] sm:$0xf]
    %v210 = vld [vmem:[%s208 + $0x4] sm:$0xf]
    %v211 = vld [vmem:[%s208 + $0x8] sm:$0xf]
    %v212 = vld [vmem:[%s208 + $0xc] sm:$0xf]
    %v213 = vld [vmem:[%s208 + $0x10] sm:$0xf]
    %v214 = vld [vmem:[%s208 + $0x14] sm:$0xf]
    %v215 = vld [vmem:[%s208 + $0x18] sm:$0xf]
    %v216 = vld [vmem:[%s208 + $0x1c] sm:$0xf]
    %v217 = vld [vmem:[%s208 + $0x20] sm:$0xf]
    %v218 = vld [vmem:[%s208 + $0x24] sm:$0xf]
    %v219 = vld [vmem:[%s208 + $0x28] sm:$0xf]
    %v220 = vld [vmem:[%s208 + $0x2c] sm:$0xf]
    %v221 = vld [vmem:[%s208 + $0x30] sm:$0xf]
    %v222 = vld [vmem:[%s208 + $0x34] sm:$0xf]
    %v223 = vld [vmem:[%s208 + $0x38] sm:$0xf]
    %v224 = vld [vmem:[%s208 + $0x3c] sm:$0xf]
    %s225 = scalar_lea.vmem %s3, 2
    %v226 = vld [vmem:[%s225] sm:$0x1]
    %v228 = vlaneseq
    %v229 = vshrl.u32 %v228, 7
    %v230 = vsub.s32 0, %v229
    %v231 = vrot.slane %v226, %v230
    %v249 = vunpack.c.l.b16 %v209
    %v250 = vunpack.c.l.b16 %v210
    %v251 = vunpack.c.l.b16 %v211
    %v252 = vunpack.c.l.b16 %v212
    %v253 = vunpack.c.l.b16 %v213
    %v254 = vunpack.c.l.b16 %v214
    %v255 = vunpack.c.l.b16 %v215
    %v256 = vunpack.c.l.b16 %v216
    %v257 = vunpack.c.l.b16 %v217
    %v258 = vunpack.c.l.b16 %v218
    %v259 = vunpack.c.l.b16 %v219
    %v260 = vunpack.c.l.b16 %v220
    %v261 = vunpack.c.l.b16 %v221
    %v262 = vunpack.c.l.b16 %v222
    %v263 = vunpack.c.l.b16 %v223
    %v264 = vunpack.c.l.b16 %v224
    %v265 = vpack.c.b16 %v250, %v249
    %v266 = vpack.c.b16 %v252, %v251
    %v267 = vpack.c.b16 %v254, %v253
    %v268 = vpack.c.b16 %v256, %v255
    %v269 = vpack.c.b16 %v258, %v257
    %v270 = vpack.c.b16 %v260, %v259
    %v271 = vpack.c.b16 %v262, %v261
    %v272 = vpack.c.b16 %v264, %v263
    %281 = vmatprep.subr.bf16.mxu0 0
    %282 = vmatpush1.bf16.msra.mxu0 %v265
    %283 = vmatprep.subr.bf16.mxu0 0
    %284 = vmatpush1.bf16.msra.mxu0 %v266
    %285 = vmatprep.subr.bf16.mxu0 0
    %286 = vmatpush1.bf16.msra.mxu0 %v267
    %287 = vmatprep.subr.bf16.mxu0 0
    %288 = vmatpush1.bf16.msra.mxu0 %v268
    %289 = vmatprep.subr.bf16.mxu0 0
    %290 = vmatpush1.bf16.msra.mxu0 %v269
    %291 = vmatprep.subr.bf16.mxu0 0
    %292 = vmatpush1.bf16.msra.mxu0 %v270
    %293 = vmatprep.subr.bf16.mxu0 0
    %294 = vmatpush1.bf16.msra.mxu0 %v271
    %295 = vmatprep.subr.bf16.mxu0 0
    %296 = vmatpush1.bf16.msra.mxu0 %v272
    %297 = vmatprep.subr.bf16.mxu0 0
    %298 = vmatpush1.bf16.msra.mxu0 0
    %299 = vmatprep.subr.bf16.mxu0 0
    %300 = vmatpush1.bf16.msra.mxu0 0
    %301 = vmatprep.subr.bf16.mxu0 0
    %302 = vmatpush1.bf16.msra.mxu0 0
    %303 = vmatprep.subr.bf16.mxu0 0
    %304 = vmatpush1.bf16.msra.mxu0 0
    %305 = vmatprep.subr.bf16.mxu0 0
    %306 = vmatpush1.bf16.msra.mxu0 0
    %307 = vmatprep.subr.bf16.mxu0 0
    %308 = vmatpush1.bf16.msra.mxu0 0
    %309 = vmatprep.subr.bf16.mxu0 0
    %310 = vmatpush1.bf16.msra.mxu0 0
    %311 = vmatprep.subr.bf16.mxu0 0
    %312 = vmatpush1.bf16.msra.mxu0 0
    %313 = vmatprep.mubr.bf16.mxu0 0
    %314 = vmatmul.mubr.bf16.gmra.mrb[0].mxu0 %v207
    %v315 = vpop.f32.mrb[0].mxu0
    %v316 = vadd.f32 %v231, %v315
    %v317 = vpop.f32.mrb[0].mxu0
    %v318 = vpop.f32.mrb[0].mxu0
    %v319 = vpop.f32.mrb[0].mxu0
    %320 = vdwg.mxu0
    %v321 = vpack.c.bf16 %v316, %v316
    %s322 = scalar_lea.vmem [#allocation2], 128
    %v323 = vld [vmem:[%s322] sm:$0xf]
    %v324 = vld [vmem:[%s322 + $0x4] sm:$0xf]
    %v325 = vld [vmem:[%s322 + $0x8] sm:$0xf]
    %v326 = vld [vmem:[%s322 + $0xc] sm:$0xf]
    %v327 = vld [vmem:[%s322 + $0x10] sm:$0xf]
    %v328 = vld [vmem:[%s322 + $0x14] sm:$0xf]
    %v329 = vld [vmem:[%s322 + $0x18] sm:$0xf]
    %v330 = vld [vmem:[%s322 + $0x1c] sm:$0xf]
    %v331 = vld [vmem:[%s322 + $0x20] sm:$0xf]
    %v332 = vld [vmem:[%s322 + $0x24] sm:$0xf]
    %v333 = vld [vmem:[%s322 + $0x28] sm:$0xf]
    %v334 = vld [vmem:[%s322 + $0x2c] sm:$0xf]
    %v335 = vld [vmem:[%s322 + $0x30] sm:$0xf]
    %v336 = vld [vmem:[%s322 + $0x34] sm:$0xf]
    %v337 = vld [vmem:[%s322 + $0x38] sm:$0xf]
    %v338 = vld [vmem:[%s322 + $0x3c] sm:$0xf]
    %s339 = scalar_lea.vmem %s3, 3
    %v340 = vld [vmem:[%s339] sm:$0x1]
    %v342 = vlaneseq
    %v343 = vshrl.u32 %v342, 7
    %v344 = vsub.s32 0, %v343
    %v345 = vrot.slane %v340, %v344
    %v363 = vunpack.c.l.b16 %v323
    %v364 = vunpack.c.l.b16 %v324
    %v365 = vunpack.c.l.b16 %v325
    %v366 = vunpack.c.l.b16 %v326
    %v367 = vunpack.c.l.b16 %v327
    %v368 = vunpack.c.l.b16 %v328
    %v369 = vunpack.c.l.b16 %v329
    %v370 = vunpack.c.l.b16 %v330
    %v371 = vunpack.c.l.b16 %v331
    %v372 = vunpack.c.l.b16 %v332
    %v373 = vunpack.c.l.b16 %v333
    %v374 = vunpack.c.l.b16 %v334
    %v375 = vunpack.c.l.b16 %v335
    %v376 = vunpack.c.l.b16 %v336
    %v377 = vunpack.c.l.b16 %v337
    %v378 = vunpack.c.l.b16 %v338
    %v379 = vpack.c.b16 %v364, %v363
    %v380 = vpack.c.b16 %v366, %v365
    %v381 = vpack.c.b16 %v368, %v367
    %v382 = vpack.c.b16 %v370, %v369
    %v383 = vpack.c.b16 %v372, %v371
    %v384 = vpack.c.b16 %v374, %v373
    %v385 = vpack.c.b16 %v376, %v375
    %v386 = vpack.c.b16 %v378, %v377
    %395 = vmatprep.subr.bf16.mxu0 0
    %396 = vmatpush1.bf16.msra.mxu0 %v379
    %397 = vmatprep.subr.bf16.mxu0 0
    %398 = vmatpush1.bf16.msra.mxu0 %v380
    %399 = vmatprep.subr.bf16.mxu0 0
    %400 = vmatpush1.bf16.msra.mxu0 %v381
    %401 = vmatprep.subr.bf16.mxu0 0
    %402 = vmatpush1.bf16.msra.mxu0 %v382
    %403 = vmatprep.subr.bf16.mxu0 0
    %404 = vmatpush1.bf16.msra.mxu0 %v383
    %405 = vmatprep.subr.bf16.mxu0 0
    %406 = vmatpush1.bf16.msra.mxu0 %v384
    %407 = vmatprep.subr.bf16.mxu0 0
    %408 = vmatpush1.bf16.msra.mxu0 %v385
    %409 = vmatprep.subr.bf16.mxu0 0
    %410 = vmatpush1.bf16.msra.mxu0 %v386
    %411 = vmatprep.subr.bf16.mxu0 0
    %412 = vmatpush1.bf16.msra.mxu0 0
    %413 = vmatprep.subr.bf16.mxu0 0
    %414 = vmatpush1.bf16.msra.mxu0 0
    %415 = vmatprep.subr.bf16.mxu0 0
    %416 = vmatpush1.bf16.msra.mxu0 0
    %417 = vmatprep.subr.bf16.mxu0 0
    %418 = vmatpush1.bf16.msra.mxu0 0
    %419 = vmatprep.subr.bf16.mxu0 0
    %420 = vmatpush1.bf16.msra.mxu0 0
    %421 = vmatprep.subr.bf16.mxu0 0
    %422 = vmatpush1.bf16.msra.mxu0 0
    %423 = vmatprep.subr.bf16.mxu0 0
    %424 = vmatpush1.bf16.msra.mxu0 0
    %425 = vmatprep.subr.bf16.mxu0 0
    %426 = vmatpush1.bf16.msra.mxu0 0
    %427 = vmatprep.mubr.bf16.mxu0 0
    %428 = vmatmul.mubr.bf16.gmra.mrb[0].mxu0 %v321
    %v429 = vpop.f32.mrb[0].mxu0
    %v430 = vadd.f32 %v345, %v429
    %v431 = vpop.f32.mrb[0].mxu0
    %v432 = vpop.f32.mrb[0].mxu0
    %v433 = vpop.f32.mrb[0].mxu0
    %434 = vdwg.mxu0
    %v435 = vtanh.pop %v430
    %436 = vst [vmem:[%s4] sm:$0xff] %v435
    // Predicated region
    $region22: #{sac_forward.1} parent=1 // pred_check
      _
    $region23: #{sac_forward.1} parent=1 // pred_check_branch
      %438 = sbr.rel (0) target = $region25
    $region24: #{sac_forward.1} parent=1 // pred_region
      _
    $region25: #{sac_forward.1} parent=1 // pred_fallthru
      _
    // Predicated region
    $region26: #{sac_forward.1} parent=1 // pred_check
      _
    $region27: #{sac_forward.1} parent=1 // pred_check_branch
      %440 = sbr.rel (0) target = $region29
    $region28: #{sac_forward.1} parent=1 // pred_region
      _
    $region29: #{sac_forward.1} parent=1 // pred_fallthru
      _
    %441 = vsyncpa [#allocation3], 1

</llo_original>
